<compile_context>
chip_gen: v7x
topology: tpu7x:2x2x1
jax: 0.10.0
libtpu: 0.0.40
codegen_flags: <defaults>
</compile_context>

<pallas_src>
import functools

import numpy as np

import jax
import jax.numpy as jnp
from jax.experimental import pallas as pl
from jax.experimental.pallas import tpu as pltpu


def _vmem_capacity_bytes():
    try:
        return int(pltpu.get_tpu_info().vmem_capacity_bytes)
    except Exception:
        return 64 * 1024 * 1024            # conservative (v7x-sized) fallback


def _channel_tile(channels, row_bytes, itemsize, vmem_cap):
    """Largest sublane-aligned channel tile keeping the x block within budget."""
    sub = max(8, 32 // max(1, itemsize))   # 8 rows f32, 16 bf16, 32 int8
    if channels <= sub:
        return channels                    # block dim == full dim is always legal
    # per-block budget (double-buffered by the pipeline): bigger on 128 MiB parts.
    budget = (6 if vmem_cap >= 100 * 2**20 else 3) * 2**20
    rows = budget // max(1, row_bytes)
    rows = max(sub, min(rows, channels))
    return max(sub, (rows // sub) * sub)


def _depthwise_kernel(x_ref, w_ref, b_ref, o_ref, *, taps, scale):
    # x_ref: (1, stride, TC, NQ) polyphase input; w_ref: (K, TC, 1); b_ref: (TC, 1)
    # o_ref: (1, TC, NOUT) -- crop, bias and ::stride are fused into this store.
    n_out = o_ref.shape[-1]
    acc = jnp.zeros((o_ref.shape[1], n_out), jnp.float32)
    for j, (r, q) in enumerate(taps):      # K is small & static -> unrolled
        xs = x_ref[0, r, :, q:q + n_out].astype(jnp.float32)   # contiguous lane slice
        acc = acc + w_ref[j].astype(jnp.float32) * xs
    out = acc * scale + b_ref[...].astype(jnp.float32)
    o_ref[0] = out.astype(o_ref.dtype)


def _grouped_kernel(x_ref, w_ref, b_ref, o_ref, *, taps, scale):
    # x_ref: (1, stride, 1, C_g, NQ); w_ref: (1, K, O_g, C_g); b_ref: (1, O_g, 1)
    # o_ref: (1, 1, O_g, NOUT).  One MXU dot per tap (contraction dim = C_g).
    n_out = o_ref.shape[-1]
    acc = jnp.zeros((o_ref.shape[2], n_out), jnp.float32)
    for j, (r, q) in enumerate(taps):
        xj = x_ref[0, r, 0, :, q:q + n_out].astype(jnp.float32)   # (C_g, NOUT)
        wj = w_ref[0, j].astype(jnp.float32)                      # (O_g, C_g)
        acc = acc + jnp.dot(wj, xj, preferred_element_type=jnp.float32)
    out = acc * scale + b_ref[0].astype(jnp.float32)
    o_ref[0, 0] = out.astype(o_ref.dtype)


def fft_conv1d_causal(x, weight, *, groups, stride=4, dilation=1, bias=None,
                      channel_tile=None):
    """Pallas-TPU forward of vanilla_conv1d_fft.

    x:      (batch, in_channels, length)
    weight: (out_channels, in_channels // groups, kernel_size)
    Returns (batch, out_channels, ceil(length / stride)).
    """
    batch, in_channels, length = x.shape
    out_channels, group_channels, kernel_size = weight.shape
    assert in_channels % groups == 0 and group_channels == in_channels // groups
    assert out_channels % groups == 0
    out_per_group = out_channels // groups

    pad = (kernel_size - 1 - (length - 1)) % kernel_size    # left ("causal") padding
    l_pad = length + pad
    k_dil = kernel_size * dilation
    assert k_dil <= l_pad, "dilated kernel window must fit in the padded length"
    off = (k_dil - kernel_size) // 2                        # centered taps, as in the reference
    scale = float(k_dil) ** -0.5                            # norm='ortho' on the K*dilation-point weight FFT
    n_out = -(-length // stride)                            # == len(range(0, length, stride))

    # --- single wrapper layout pass: circular-wrap prefix + left pad + polyphase ---
    # x_poly[b, r, c, q] = x_ext[b, c, q*stride + r],  x_ext = [x_pad[-k_dil:], x_pad, 0...]
    x_pad = x if pad == 0 else jnp.pad(x, ((0, 0), (0, 0), (pad, 0)))
    l_ext = l_pad + k_dil
    l4 = -(-l_ext // stride) * stride
    parts = [x_pad[:, :, l_pad - k_dil:], x_pad]
    if l4 > l_ext:
        parts.append(jnp.zeros((batch, in_channels, l4 - l_ext), x.dtype))
    x_ext = jnp.concatenate(parts, axis=-1)
    n_q = l4 // stride
    x_poly = x_ext.reshape(batch, in_channels, n_q, stride).transpose(0, 3, 1, 2)

    # tap j reads x_ext[a_j + t*stride] with a_j = k_dil - off - j  ->  phase/offset pairs.
    taps = tuple(((k_dil - off - j) % stride, (k_dil - off - j) // stride)
                 for j in range(kernel_size))
    assert all(q + n_out <= n_q for _, q in taps)

    bias_arr = bias if bias is not None else jnp.zeros((out_channels,), x.dtype)

    vmem_cap = _vmem_capacity_bytes()
    compiler_params = pltpu.CompilerParams(
        dimension_semantics=("parallel", "parallel"),
        vmem_limit_bytes=min(96 * 2**20, int(vmem_cap * 0.7)),
    )

    if group_channels == 1 and out_per_group == 1:
        # Depthwise fast path (groups == in_channels == out_channels).
        w_kc1 = jnp.transpose(weight.reshape(in_channels, kernel_size))[:, :, None]  # (K, C, 1)
        b_c1 = bias_arr.reshape(in_channels, 1)
        itemsize = x.dtype.itemsize
        row_bytes = stride * n_q * itemsize
        tc = channel_tile or _channel_tile(in_channels, row_bytes, itemsize, vmem_cap)
        sub = max(8, 32 // max(1, itemsize))
        if batch * pl.cdiv(in_channels, tc) < 2 and in_channels > sub:
            # guarantee >=2 grid steps so v7x's second TensorCore gets work
            tc = max(sub, ((in_channels + 1) // 2 // sub) * sub)
        kernel = functools.partial(_depthwise_kernel, taps=taps, scale=scale)
        return pl.pallas_call(
            kernel,
            out_shape=jax.ShapeDtypeStruct((batch, in_channels, n_out), x.dtype),
            grid_spec=pltpu.PrefetchScalarGridSpec(
                num_scalar_prefetch=0,
                grid=(pl.cdiv(in_channels, tc), batch),   # channel outer -> weight not re-DMAed
                in_specs=[
                    pl.BlockSpec((1, stride, tc, n_q), lambda c, b: (b, 0, c, 0)),
                    pl.BlockSpec((kernel_size, tc, 1), lambda c, b: (0, c, 0)),
                    pl.BlockSpec((tc, 1), lambda c, b: (c, 0)),
                ],
                out_specs=pl.BlockSpec((1, tc, n_out), lambda c, b: (b, c, 0)),
            ),
            compiler_params=compiler_params,
        )(x_poly, w_kc1, b_c1)

    # General grouped path: one (C_g x time) block per (group, batch), MXU dots per tap.
    xg = x_poly.reshape(batch, stride, groups, group_channels, n_q)
    wg = weight.reshape(groups, out_per_group, group_channels, kernel_size)
    wg = wg.transpose(0, 3, 1, 2)                           # (G, K, O_g, C_g)
    bg = bias_arr.reshape(groups, out_per_group, 1)
    kernel = functools.partial(_grouped_kernel, taps=taps, scale=scale)
    yg = pl.pallas_call(
        kernel,
        out_shape=jax.ShapeDtypeStruct((batch, groups, out_per_group, n_out), x.dtype),
        grid_spec=pltpu.PrefetchScalarGridSpec(
            num_scalar_prefetch=0,
            grid=(groups, batch),
            in_specs=[
                pl.BlockSpec((1, stride, 1, group_channels, n_q),
                             lambda g, b: (b, 0, g, 0, 0)),
                pl.BlockSpec((1, kernel_size, out_per_group, group_channels),
                             lambda g, b: (g, 0, 0, 0)),
                pl.BlockSpec((1, out_per_group, 1), lambda g, b: (g, 0, 0)),
            ],
            out_specs=pl.BlockSpec((1, 1, out_per_group, n_out),
                                   lambda g, b: (b, g, 0, 0)),
        ),
        compiler_params=compiler_params,
    )(xg, wg, bg)
    return yg.reshape(batch, out_channels, n_out)


def _reference_fft_conv(x, weight, *, groups, stride, dilation, bias=None):
    """Numpy FFT reference mirroring the (fixed) torch forward semantics."""
    x = np.asarray(x, dtype=np.float32)
    w = np.asarray(weight, dtype=np.float32)
    batch, in_channels, length = x.shape
    out_channels, group_channels, kernel_size = w.shape
    pad = (kernel_size - 1 - (length - 1)) % kernel_size
    l_pad = length + pad
    k_dil = kernel_size * dilation
    off = (k_dil - kernel_size) // 2
    x_pad = np.pad(x, ((0, 0), (0, 0), (pad, 0)))
    w_dil = np.zeros((out_channels, group_channels, k_dil), np.float32)
    w_dil[:, :, off:off + kernel_size] = w
    w_full = np.pad(w_dil, ((0, 0), (0, 0), (0, l_pad - k_dil)))
    xg = x_pad.reshape(batch, groups, group_channels, l_pad)
    x_fft = np.fft.fft(xg, axis=-1)
    w_fft = np.fft.fft(w_full, axis=-1) / np.sqrt(k_dil)    # ortho norm of the k_dil-point FFT
    wg = w_fft.reshape(groups, out_channels // groups, group_channels, l_pad)
    y_fft = (x_fft[:, :, None, :, :] * wg[None, :, :, :, :]).sum(axis=3)
    y = np.fft.ifft(y_fft, axis=-1).real
    y = y.reshape(batch, out_channels, l_pad)[:, :, :length]
    if bias is not None:
        y = y + np.asarray(bias)[None, :, None]
    if stride > 1:
        y = y[:, :, ::stride]
    return y.astype(np.float32)


if __name__ == "__main__":
    key = jax.random.PRNGKey(0)
    ka, kb, kc, kd, ke, kf = jax.random.split(key, 6)

    # Depthwise case (groups == in_channels == out_channels), stride 4, with bias.
    batch, channels, length, ksize = 2, 8, 16, 4
    x = jax.random.normal(ka, (batch, channels, length), dtype=jnp.float32)
    w = jax.random.normal(kb, (channels, 1, ksize), dtype=jnp.float32) * (2.0 / ksize) ** 0.5
    bias = jax.random.normal(ke, (channels,), dtype=jnp.float32) * 0.1
    out = fft_conv1d_causal(x, w, groups=channels, stride=4, dilation=1, bias=bias)
    out = jax.block_until_ready(out)
    ref = _reference_fft_conv(x, w, groups=channels, stride=4, dilation=1, bias=bias)
    assert out.shape == ref.shape, (out.shape, ref.shape)
    assert np.allclose(np.asarray(out), ref, atol=1e-4, rtol=1e-4), \
        float(np.max(np.abs(np.asarray(out) - ref)))

    # General grouped case (group_channels > 1, out_per_group > 1, dilation > 1), stride 2.
    b2, cin2, cout2, g2, k2, len2 = 2, 4, 6, 2, 3, 16
    x2 = jax.random.normal(kc, (b2, cin2, len2), dtype=jnp.float32)
    w2 = jax.random.normal(kd, (cout2, cin2 // g2, k2), dtype=jnp.float32) * 0.5
    bias2 = jax.random.normal(kf, (cout2,), dtype=jnp.float32) * 0.1
    out2 = fft_conv1d_causal(x2, w2, groups=g2, stride=2, dilation=2, bias=bias2)
    out2 = jax.block_until_ready(out2)
    ref2 = _reference_fft_conv(x2, w2, groups=g2, stride=2, dilation=2, bias=bias2)
    assert out2.shape == ref2.shape, (out2.shape, ref2.shape)
    assert np.allclose(np.asarray(out2), ref2, atol=1e-4, rtol=1e-4), \
        float(np.max(np.abs(np.asarray(out2) - ref2)))

    print("KERNEL_OK")
</pallas_src>

<mosaic_0001>
module attributes {stable_mosaic.version = 11 : i64} {
  func.func @_depthwise_kernel(%arg0: i32, %arg1: i32, %arg2: memref<1x4x8x5xf32, #tpu.memory_space<vmem>>, %arg3: memref<4x8x1xf32, #tpu.memory_space<vmem>>, %arg4: memref<8x1xf32, #tpu.memory_space<vmem>>, %arg5: memref<1x8x4xf32, #tpu.memory_space<vmem>>) attributes {dimension_semantics = [#tpu.dimension_semantics<parallel>, #tpu.dimension_semantics<parallel>], iteration_bounds = array<i64: 1, 2>, scalar_prefetch = 0 : i64, scratch_operands = 0 : i64, tpu.core_type = #tpu.core_type<tc>, window_params = [{transform_indices = @transform_0, window_bounds = array<i64: 1, 4, 8, 5>}, {transform_indices = @transform_1, window_bounds = array<i64: 4, 8, 1>}, {transform_indices = @transform_2, window_bounds = array<i64: 8, 1>}, {transform_indices = @transform_3, window_bounds = array<i64: 1, 8, 4>}]} {
    %cst = arith.constant 0.000000e+00 : f32
    %0 = vector.broadcast %cst : f32 to vector<8x4xf32>
    %c0 = arith.constant 0 : index
    %c0_0 = arith.constant 0 : index
    %c0_1 = arith.constant 0 : index
    %c1 = arith.constant 1 : index
    %1 = vector.load %arg2[%c0, %c0_0, %c0_1, %c1] : memref<1x4x8x5xf32, #tpu.memory_space<vmem>>, vector<1x1x8x4xf32>
    %2 = vector.shape_cast %1 : vector<1x1x8x4xf32> to vector<8x4xf32>
    %c0_2 = arith.constant 0 : index
    %c0_3 = arith.constant 0 : index
    %c0_4 = arith.constant 0 : index
    %3 = vector.load %arg3[%c0_2, %c0_3, %c0_4] : memref<4x8x1xf32, #tpu.memory_space<vmem>>, vector<1x8x1xf32>
    %4 = vector.shape_cast %3 : vector<1x8x1xf32> to vector<8x1xf32>
    %5 = vector.broadcast %4 : vector<8x1xf32> to vector<8x4xf32>
    %6 = arith.mulf %5, %2 : vector<8x4xf32>
    %7 = arith.addf %0, %6 : vector<8x4xf32>
    %c0_5 = arith.constant 0 : index
    %c3 = arith.constant 3 : index
    %c0_6 = arith.constant 0 : index
    %c0_7 = arith.constant 0 : index
    %8 = vector.load %arg2[%c0_5, %c3, %c0_6, %c0_7] : memref<1x4x8x5xf32, #tpu.memory_space<vmem>>, vector<1x1x8x4xf32>
    %9 = vector.shape_cast %8 : vector<1x1x8x4xf32> to vector<8x4xf32>
    %c1_8 = arith.constant 1 : index
    %c0_9 = arith.constant 0 : index
    %c0_10 = arith.constant 0 : index
    %10 = vector.load %arg3[%c1_8, %c0_9, %c0_10] : memref<4x8x1xf32, #tpu.memory_space<vmem>>, vector<1x8x1xf32>
    %11 = vector.shape_cast %10 : vector<1x8x1xf32> to vector<8x1xf32>
    %12 = vector.broadcast %11 : vector<8x1xf32> to vector<8x4xf32>
    %13 = arith.mulf %12, %9 : vector<8x4xf32>
    %14 = arith.addf %7, %13 : vector<8x4xf32>
    %c0_11 = arith.constant 0 : index
    %c2 = arith.constant 2 : index
    %c0_12 = arith.constant 0 : index
    %c0_13 = arith.constant 0 : index
    %15 = vector.load %arg2[%c0_11, %c2, %c0_12, %c0_13] : memref<1x4x8x5xf32, #tpu.memory_space<vmem>>, vector<1x1x8x4xf32>
    %16 = vector.shape_cast %15 : vector<1x1x8x4xf32> to vector<8x4xf32>
    %c2_14 = arith.constant 2 : index
    %c0_15 = arith.constant 0 : index
    %c0_16 = arith.constant 0 : index
    %17 = vector.load %arg3[%c2_14, %c0_15, %c0_16] : memref<4x8x1xf32, #tpu.memory_space<vmem>>, vector<1x8x1xf32>
    %18 = vector.shape_cast %17 : vector<1x8x1xf32> to vector<8x1xf32>
    %19 = vector.broadcast %18 : vector<8x1xf32> to vector<8x4xf32>
    %20 = arith.mulf %19, %16 : vector<8x4xf32>
    %21 = arith.addf %14, %20 : vector<8x4xf32>
    %c0_17 = arith.constant 0 : index
    %c1_18 = arith.constant 1 : index
    %c0_19 = arith.constant 0 : index
    %c0_20 = arith.constant 0 : index
    %22 = vector.load %arg2[%c0_17, %c1_18, %c0_19, %c0_20] : memref<1x4x8x5xf32, #tpu.memory_space<vmem>>, vector<1x1x8x4xf32>
    %23 = vector.shape_cast %22 : vector<1x1x8x4xf32> to vector<8x4xf32>
    %c3_21 = arith.constant 3 : index
    %c0_22 = arith.constant 0 : index
    %c0_23 = arith.constant 0 : index
    %24 = vector.load %arg3[%c3_21, %c0_22, %c0_23] : memref<4x8x1xf32, #tpu.memory_space<vmem>>, vector<1x8x1xf32>
    %25 = vector.shape_cast %24 : vector<1x8x1xf32> to vector<8x1xf32>
    %26 = vector.broadcast %25 : vector<8x1xf32> to vector<8x4xf32>
    %27 = arith.mulf %26, %23 : vector<8x4xf32>
    %28 = arith.addf %21, %27 : vector<8x4xf32>
    %cst_24 = arith.constant 5.000000e-01 : f32
    %29 = vector.broadcast %cst_24 : f32 to vector<8x4xf32>
    %30 = arith.mulf %28, %29 : vector<8x4xf32>
    %c0_25 = arith.constant 0 : index
    %c0_26 = arith.constant 0 : index
    %31 = vector.load %arg4[%c0_25, %c0_26] : memref<8x1xf32, #tpu.memory_space<vmem>>, vector<8x1xf32>
    %32 = vector.broadcast %31 : vector<8x1xf32> to vector<8x4xf32>
    %33 = arith.addf %30, %32 : vector<8x4xf32>
    %c0_27 = arith.constant 0 : index
    %c0_28 = arith.constant 0 : index
    %c0_29 = arith.constant 0 : index
    %34 = vector.load %arg5[%c0_27, %c0_28, %c0_29] : memref<1x8x4xf32, #tpu.memory_space<vmem>>, vector<1x8x4xf32>
    %35 = vector.shape_cast %34 : vector<1x8x4xf32> to vector<8x4xf32>
    %36 = vector.shape_cast %33 : vector<8x4xf32> to vector<1x8x4xf32>
    tpu.vector_store %arg5[%c0_27, %c0_28, %c0_29], %36 {strides = array<i32>} : memref<1x8x4xf32, #tpu.memory_space<vmem>>, vector<1x8x4xf32>,
    return
  }
  func.func @transform_0(%arg0: i32, %arg1: i32) -> (i32, i32, i32, i32) {
    %c0_i32 = arith.constant 0 : i32
    %c0_i32_0 = arith.constant 0 : i32
    %c0_i32_1 = arith.constant 0 : i32
    return %arg1, %c0_i32, %arg0, %c0_i32_0 : i32, i32, i32, i32
  }
  func.func @transform_1(%arg0: i32, %arg1: i32) -> (i32, i32, i32) {
    %c0_i32 = arith.constant 0 : i32
    %c0_i32_0 = arith.constant 0 : i32
    %c0_i32_1 = arith.constant 0 : i32
    return %c0_i32, %arg0, %c0_i32_0 : i32, i32, i32
  }
  func.func @transform_2(%arg0: i32, %arg1: i32) -> (i32, i32) {
    %c0_i32 = arith.constant 0 : i32
    %c0_i32_0 = arith.constant 0 : i32
    return %arg0, %c0_i32 : i32, i32
  }
  func.func @transform_3(%arg0: i32, %arg1: i32) -> (i32, i32, i32) {
    %c0_i32 = arith.constant 0 : i32
    %c0_i32_0 = arith.constant 0 : i32
    return %arg1, %arg0, %c0_i32 : i32, i32, i32
  }
}

</mosaic_0001>

<llo_original>
// kernel: tpu_custom_call.1
$region0: #{tpu_custom_call.1}
  #allocation0 [shape = 'u32[]', space=smem, size = 0x4, offset = 0x4, fixed_abs, tag = 'smem constant byte address 0x4 - core index']
  #allocation1 [shape = 'u32[144,128]{1,0:T(1,128)}', space=vmem, size = 0x12000, scoped, tag = 'internal scratch']
  %s0 = inlined_call_operand.vmem [shape: f32[2,4,8,5], index: 0, kind: input, shape index: {}]
  %s1 = inlined_call_operand.vmem [shape: f32[4,8,1], index: 1, kind: input, shape index: {}]
  %s2 = inlined_call_operand.vmem [shape: f32[8,1], index: 2, kind: input, shape index: {}]
  %s3 = inlined_call_operand.vmem [shape: f32[2,8,4], index: 3, kind: output, shape index: {}]
  %s4 = sld [smem:[#allocation0]]
  $region45: #{tpu_custom_call.1} parent=0
    _
  %s6 = ssub.s32 1, %s4
  %s7 = scalar_select 0, %s6, %s4
  loop: start=0, step=1, limit=4
  $region2: #{tpu_custom_call.1} parent=0 // loop_pre_header
    _
  $region3: #{tpu_custom_call.1} parent=0 // loop_header
    %s9 = sphi 0, %s13
    %p10 = scmp.ge.s32.totalorder %s9, 4
    %s16 = sphi 0, %s28
    %s17 = sphi 0, %s24
    %s18 = sphi 0, %s16
    %s19 = sphi 0, %s17
    %s20 = sphi 0, %s18
    %s21 = sphi 0, %s19
    %s33 = sphi 0, %s35
    %s36 = sphi 0, %s33
    %s37 = sphi 0, %s36
    %s53 = sphi 0, %s37
    %s59 = sphi 0, %s61
    %s62 = sphi 0, %s59
    %s63 = sphi 0, %s62
    %s79 = sphi 0, %s63
    %s85 = sphi 0, %s87
    %s88 = sphi 0, %s85
    %s89 = sphi 0, %s88
    %s105 = sphi 0, %s89
    %s113 = sphi 0, %s115
    %s116 = sphi 0, %s113
    %s117 = sphi 0, %s116
    %s133 = sphi 0, %s117
  $region4: #{tpu_custom_call.1} parent=0 // loop_header_branch
    %12 = sbr.rel (%p10) target = $region8
  $region5: #{tpu_custom_call.1} parent=0 // loop_body
    %s14 = ssub.s32 %s9, 1
    %s15 = ssub.s32 %s9, 2
    %s22 = sadd.s32 1, %s17
    %p23 = scmp.ge.s32.totalorder %s22, 2
    %s24 = scalar_select %p23, 0, %s22
    %s25 = sadd.s32 1, %s16
    %s26 = scalar_select %p23, %s25, %s16
    %p27 = scmp.ge.s32.totalorder %s26, 1
    %s28 = scalar_select %p27, 0, %s26
    %s29 = ssub.s32 %s17, %s24
    %s30 = ssub.s32 %s16, %s28
    %s31 = sor.u32 %s29, %s30
    %p32 = scmp.eq.s32.totalorder %s31, 0
    %s34 = sadd.s32 %s33, 1
    %s35 = scalar_select %p32, %s33, %s34
    %p38 = pneg %p32
    %p39 = scmp.eq.s32.totalorder %s9, 1
    %p40 = por %p38, %p39
    %p41 = scmp.ne.s32.totalorder %s33, %s36
    %p42 = scmp.eq.s32.totalorder %s9, 0
    %p43 = por %p41, %p42
    %p44 = scmp.ne.s32.totalorder %s33, %s36
    %p45 = scmp.eq.s32.totalorder %s14, 1
    %p46 = por %p44, %p45
    %p47 = scmp.ne.s32.totalorder %s36, %s37
    %p48 = scmp.eq.s32.totalorder %s14, 0
    %p49 = por %p47, %p48
    %p50 = scmp.ne.s32.totalorder %s36, %s37
    %p51 = scmp.eq.s32.totalorder %s15, 1
    %p52 = por %p50, %p51
    %p54 = scmp.ne.s32.totalorder %s37, %s53
    %p55 = scmp.eq.s32.totalorder %s15, 0
    %p56 = por %p54, %p55
    %s57 = ssub.s32 %s16, %s28
    %p58 = scmp.eq.s32.totalorder %s57, 0
    %s60 = sadd.s32 %s59, 1
    %s61 = scalar_select %p58, %s59, %s60
    %p64 = pneg %p58
    %p65 = scmp.eq.s32.totalorder %s9, 1
    %p66 = por %p64, %p65
    %p67 = scmp.ne.s32.totalorder %s59, %s62
    %p68 = scmp.eq.s32.totalorder %s9, 0
    %p69 = por %p67, %p68
    %p70 = scmp.ne.s32.totalorder %s59, %s62
    %p71 = scmp.eq.s32.totalorder %s14, 1
    %p72 = por %p70, %p71
    %p73 = scmp.ne.s32.totalorder %s62, %s63
    %p74 = scmp.eq.s32.totalorder %s14, 0
    %p75 = por %p73, %p74
    %p76 = scmp.ne.s32.totalorder %s62, %s63
    %p77 = scmp.eq.s32.totalorder %s15, 1
    %p78 = por %p76, %p77
    %p80 = scmp.ne.s32.totalorder %s63, %s79
    %p81 = scmp.eq.s32.totalorder %s15, 0
    %p82 = por %p80, %p81
    %s83 = ssub.s32 %s16, %s28
    %p84 = scmp.eq.s32.totalorder %s83, 0
    %s86 = sadd.s32 %s85, 1
    %s87 = scalar_select %p84, %s85, %s86
    %p90 = pneg %p84
    %p91 = scmp.eq.s32.totalorder %s9, 1
    %p92 = por %p90, %p91
    %p93 = scmp.ne.s32.totalorder %s85, %s88
    %p94 = scmp.eq.s32.totalorder %s9, 0
    %p95 = por %p93, %p94
    %p96 = scmp.ne.s32.totalorder %s85, %s88
    %p97 = scmp.eq.s32.totalorder %s14, 1
    %p98 = por %p96, %p97
    %p99 = scmp.ne.s32.totalorder %s88, %s89
    %p100 = scmp.eq.s32.totalorder %s14, 0
    %p101 = por %p99, %p100
    %p102 = scmp.ne.s32.totalorder %s88, %s89
    %p103 = scmp.eq.s32.totalorder %s15, 1
    %p104 = por %p102, %p103
    %p106 = scmp.ne.s32.totalorder %s89, %s105
    %p107 = scmp.eq.s32.totalorder %s15, 0
    %p108 = por %p106, %p107
    %s109 = ssub.s32 %s17, %s24
    %s110 = ssub.s32 %s16, %s28
    %s111 = sor.u32 %s109, %s110
    %p112 = scmp.eq.s32.totalorder %s111, 0
    %s114 = sadd.s32 %s113, 1
    %s115 = scalar_select %p112, %s113, %s114
    %p118 = pneg %p112
    %p119 = scmp.eq.s32.totalorder %s9, 1
    %p120 = por %p118, %p119
    %p121 = scmp.ne.s32.totalorder %s113, %s116
    %p122 = scmp.eq.s32.totalorder %s9, 0
    %p123 = por %p121, %p122
    %p124 = scmp.ne.s32.totalorder %s113, %s116
    %p125 = scmp.eq.s32.totalorder %s14, 1
    %p126 = por %p124, %p125
    %p127 = scmp.ne.s32.totalorder %s116, %s117
    %p128 = scmp.eq.s32.totalorder %s14, 0
    %p129 = por %p127, %p128
    %p130 = scmp.ne.s32.totalorder %s116, %s117
    %p131 = scmp.eq.s32.totalorder %s15, 1
    %p132 = por %p130, %p131
    %p134 = scmp.ne.s32.totalorder %s117, %s133
    %p135 = scmp.eq.s32.totalorder %s15, 0
    %p136 = por %p134, %p135
    %p137 = scmp.le.s32.totalorder 1, %s9
    %p138 = scmp.lt.s32.totalorder %s9, 3
    %p139 = pnand %p137, %p138
    %p140 = pneg %p139
    // Predicated region
    $region9: #{tpu_custom_call.1} parent=5 // pred_check
      _
    $region10: #{tpu_custom_call.1} parent=5 // pred_check_branch
      %142 = sbr.rel (%p139) target = $region12
    $region11: #{tpu_custom_call.1} parent=5 // pred_region
      %s143 = ssub.s32 %s9, 1
      // Predicated region
      $region13: #{tpu_custom_call.1} parent=11 // pred_check
        %p144 = pneg %p75
      $region14: #{tpu_custom_call.1} parent=11 // pred_check_branch
        %146 = sbr.rel (%p144) target = $region16
      $region15: #{tpu_custom_call.1} parent=11 // pred_region
        %p147 = scmp.lt.s32.totalorder %s18, 0
        %s148 = scalar_select %p147, %s18, 0
        %s149 = smul.addr %s148, 8
        %s150 = scalar_lea.vmem %s1, %s149
      $region16: #{tpu_custom_call.1} parent=11 // pred_fallthru
        _
      // Predicated region
      $region17: #{tpu_custom_call.1} parent=11 // pred_check
        %p151 = pneg %p101
      $region18: #{tpu_custom_call.1} parent=11 // pred_check_branch
        %153 = sbr.rel (%p151) target = $region20
      $region19: #{tpu_custom_call.1} parent=11 // pred_region
        %p154 = scmp.lt.s32.totalorder %s18, 0
        %s155 = scalar_select %p154, %s18, 0
        %s156 = smul.addr %s155, 8
        %s157 = scalar_lea.vmem %s2, %s156
      $region20: #{tpu_custom_call.1} parent=11 // pred_fallthru
        _
    $region12: #{tpu_custom_call.1} parent=5 // pred_fallthru
      _
    %p158 = scmp.lt.s32.totalorder %s9, 2
    // Predicated region
    $region21: #{tpu_custom_call.1} parent=5 // pred_check
      %p159 = pneg %p158
    $region22: #{tpu_custom_call.1} parent=5 // pred_check_branch
      %161 = sbr.rel (%p159) target = $region24
    $region23: #{tpu_custom_call.1} parent=5 // pred_region
      // Predicated region
      $region25: #{tpu_custom_call.1} parent=23 // pred_check
        %p162 = pneg %p43
      $region26: #{tpu_custom_call.1} parent=23 // pred_check_branch
        %164 = sbr.rel (%p162) target = $region28
      $region27: #{tpu_custom_call.1} parent=23 // pred_region
        %p165 = scmp.lt.s32.totalorder %s17, 1
        %s166 = scalar_select %p165, %s17, 1
        %p167 = scmp.lt.s32.totalorder %s16, 0
        %s168 = scalar_select %p167, %s16, 0
        %s169 = smul.addr %s166, 4
        %s170 = sadd.s32 %s168, %s169
        %s171 = smul.addr %s170, 8
        %s172 = scalar_lea.vmem %s0, %s171
      $region28: #{tpu_custom_call.1} parent=23 // pred_fallthru
        _
    $region24: #{tpu_custom_call.1} parent=5 // pred_fallthru
      _
    %p173 = scmp.le.s32.totalorder 1, %s9
    %p174 = scmp.lt.s32.totalorder %s9, 3
    %p175 = pnand %p173, %p174
    %p176 = pneg %p175
    // Predicated region
    $region29: #{tpu_custom_call.1} parent=5 // pred_check
      _
    $region30: #{tpu_custom_call.1} parent=5 // pred_check_branch
      %178 = sbr.rel (%p175) target = $region32
    $region31: #{tpu_custom_call.1} parent=5 // pred_region
      %s179 = ssub.s32 %s9, 1
      %p180 = scmp.lt.s32.totalorder %s19, 1
      %s181 = scalar_select %p180, %s19, 1
      %p182 = scmp.lt.s32.totalorder %s18, 0
      %s183 = scalar_select %p182, %s18, 0
      %s184 = smul.addr %s181, 4
      %s185 = sadd.s32 %s183, %s184
      %s186 = smul.addr %s185, 8
      %s187 = scalar_lea.vmem %s0, %s186
      %p188 = pneg %p49
      %p189 = pneg %p46
      %p190 = scmp.lt.s32.totalorder %s18, 0
      %s191 = scalar_select %p190, %s18, 0
      %s192 = smul.addr %s191, 8
      %s193 = scalar_lea.vmem %s1, %s192
      %p194 = pneg %p75
      %p195 = pneg %p72
      %p196 = scmp.lt.s32.totalorder %s18, 0
      %s197 = scalar_select %p196, %s18, 0
      %s198 = smul.addr %s197, 8
      %s199 = scalar_lea.vmem %s2, %s198
      %p200 = pneg %p101
      %p201 = pneg %p98
      %p202 = pneg %p129
      %p203 = pneg %p126
      %p204 = scmp.lt.s32.totalorder %s19, 1
      %s205 = scalar_select %p204, %s19, 1
      %p206 = scmp.lt.s32.totalorder %s18, 0
      %s207 = scalar_select %p206, %s18, 0
      %s208 = sadd.s32 %s207, %s205
      %s209 = smul.addr %s208, 8
      %s210 = scalar_lea.vmem %s3, %s209
      %p211 = scmp.lt.s32.totalorder %s19, 1
      %s212 = scalar_select %p211, %s19, 1
      %p213 = scmp.lt.s32.totalorder %s18, 0
      %s214 = scalar_select %p213, %s18, 0
      %s215 = smul.addr %s212, 4
      %s216 = sadd.s32 %s214, %s215
      %s217 = smul.addr %s216, 8
      %s218 = scalar_lea.vmem %s0, %s217
      %p219 = scmp.lt.s32.totalorder %s18, 0
      %s220 = scalar_select %p219, %s18, 0
      %s221 = smul.addr %s220, 8
      %s222 = scalar_lea.vmem %s1, %s221
      %p223 = scmp.lt.s32.totalorder %s18, 0
      %s224 = scalar_select %p223, %s18, 0
      %s225 = smul.addr %s224, 8
      %s226 = scalar_lea.vmem %s2, %s225
      %p227 = scmp.lt.s32.totalorder %s19, 1
      %s228 = scalar_select %p227, %s19, 1
      %p229 = scmp.lt.s32.totalorder %s18, 0
      %s230 = scalar_select %p229, %s18, 0
      %s231 = sadd.s32 %s230, %s228
      %s232 = smul.addr %s231, 8
      %s233 = scalar_lea.vmem %s3, %s232
      %v234 = vld [vmem:[%s218] sm:$0xff]
      %v235 = vld [vmem:[%s222] sm:$0xff]
      %237 = vset.pattern.permute.xlu0 0
      %238 = vperm.xlu0 %237, %v235
      %v239 = vpop.permute.xlu0 %238
      %v241 = vmul.f32 %v239, %v234
      %v242 = vadd.f32 %v241, 0.0
      %s243 = scalar_lea.vmem %s218, 24
      %v244 = vld [vmem:[%s243] sm:$0xff]
      %s245 = scalar_lea.vmem %s222, 8
      %v246 = vld [vmem:[%s245] sm:$0xff]
      %248 = vset.pattern.permute.xlu0 0
      %249 = vperm.xlu0 %248, %v246
      %v250 = vpop.permute.xlu0 %249
      %v252 = vmul.f32 %v250, %v244
      %254 = vrot.lane.b32.xlu0 %v252, 1
      %v255 = vpop.permute.xlu0 %254
      %v257 = vadd.f32 %v242, %v255
      %s258 = scalar_lea.vmem %s218, 16
      %v259 = vld [vmem:[%s258] sm:$0xff]
      %s260 = scalar_lea.vmem %s222, 16
      %v261 = vld [vmem:[%s260] sm:$0xff]
      %263 = vset.pattern.permute.xlu0 0
      %264 = vperm.xlu0 %263, %v261
      %v265 = vpop.permute.xlu0 %264
      %v267 = vmul.f32 %v265, %v259
      %269 = vrot.lane.b32.xlu0 %v267, 1
      %v270 = vpop.permute.xlu0 %269
      %v272 = vadd.f32 %v257, %v270
      %s273 = scalar_lea.vmem %s218, 8
      %v274 = vld [vmem:[%s273] sm:$0xff]
      %s275 = scalar_lea.vmem %s222, 24
      %v276 = vld [vmem:[%s275] sm:$0xff]
      %278 = vset.pattern.permute.xlu0 0
      %279 = vperm.xlu0 %278, %v276
      %v280 = vpop.permute.xlu0 %279
      %v282 = vmul.f32 %v280, %v274
      %284 = vrot.lane.b32.xlu0 %v282, 1
      %v285 = vpop.permute.xlu0 %284
      %v287 = vadd.f32 %v272, %v285
      %v288 = vmul.f32 %v287, 0.5
      %v289 = vld [vmem:[%s226] sm:$0xff]
      %291 = vset.pattern.permute.xlu0 0
      %292 = vperm.xlu0 %291, %v289
      %v293 = vpop.permute.xlu0 %292
      %v295 = vadd.f32 %v288, %v293
      %297 = vrot.lane.b32.xlu0 %v295, 127
      %v298 = vpop.permute.xlu0 %297
      %vm300 = vcmask 31744
      %301 = vst.msk [vmem:[%s233] sm:$0xff] %vm300, %v298
      %p302 = scmp.lt.s32.totalorder %s19, 1
      %s303 = scalar_select %p302, %s19, 1
      %p304 = scmp.lt.s32.totalorder %s18, 0
      %s305 = scalar_select %p304, %s18, 0
      %s306 = sadd.s32 %s305, %s303
      %s307 = smul.addr %s306, 8
      %s308 = scalar_lea.vmem %s3, %s307
      // Predicated region
      $region33: #{tpu_custom_call.1} parent=31 // pred_check
        %p309 = pneg %p126
      $region34: #{tpu_custom_call.1} parent=31 // pred_check_branch
        %311 = sbr.rel (%p309) target = $region36
      $region35: #{tpu_custom_call.1} parent=31 // pred_region
        _
      $region36: #{tpu_custom_call.1} parent=31 // pred_fallthru
        _
    $region32: #{tpu_custom_call.1} parent=5 // pred_fallthru
      _
    %p312 = scmp.le.s32.totalorder 2, %s9
    // Predicated region
    $region37: #{tpu_custom_call.1} parent=5 // pred_check
      %p313 = pneg %p312
    $region38: #{tpu_custom_call.1} parent=5 // pred_check_branch
      %315 = sbr.rel (%p313) target = $region40
    $region39: #{tpu_custom_call.1} parent=5 // pred_region
      %s316 = ssub.s32 %s9, 2
      // Predicated region
      $region41: #{tpu_custom_call.1} parent=39 // pred_check
        %p317 = pneg %p132
      $region42: #{tpu_custom_call.1} parent=39 // pred_check_branch
        %319 = sbr.rel (%p317) target = $region44
      $region43: #{tpu_custom_call.1} parent=39 // pred_region
        %p320 = scmp.lt.s32.totalorder %s21, 1
        %s321 = scalar_select %p320, %s21, 1
        %p322 = scmp.lt.s32.totalorder %s20, 0
        %s323 = scalar_select %p322, %s20, 0
        %s324 = sadd.s32 %s323, %s321
        %s325 = smul.addr %s324, 8
        %s326 = scalar_lea.vmem %s3, %s325
      $region44: #{tpu_custom_call.1} parent=39 // pred_fallthru
        _
    $region40: #{tpu_custom_call.1} parent=5 // pred_fallthru
      _
  $region6: #{tpu_custom_call.1} parent=0 // loop_footer
    %s13 = sadd.s32 1, %s9
  $region7: #{tpu_custom_call.1} parent=0 // loop_footer_branch
    %8 = sbr.rel target = $region3
  $region8: #{tpu_custom_call.1} parent=0 // loop_exit
    _

</llo_original>
